<compile_context>
chip_gen: v7x
topology: tpu7x:2x2x1
jax: 0.10.0
libtpu: 0.0.40
codegen_flags: <defaults>
</compile_context>

<pallas_src>
import functools

import jax
import jax.numpy as jnp
from jax import lax
from jax.experimental import pallas as pl
from jax.experimental.pallas import tpu as pltpu


def _round_up(x, m):
    return -(-x // m) * m


def simple_nn_kernel(y_ref, w_ref, b_ref, o_ref, *, block_n):
    """One (batch tile, out-dim tile): out = sigmoid(y @ W[nblk].T + b[nblk]) - y[:, nblk]."""
    j = pl.program_id(1)                                 # output-dim tile index
    y = y_ref[...]                                       # (tb, D) f32
    w = w_ref[...]                                       # (tn, D) f32 or bf16
    lhs = y.astype(jnp.bfloat16) if w.dtype == jnp.bfloat16 else y
    # z[b, i] = sum_j y[b, j] * W[i, j]  -- contract against W directly, no transpose.
    z = lax.dot_general(
        lhs, w,
        dimension_numbers=(((1,), (1,)), ((), ())),      # 'bj,ij->bi'
        preferred_element_type=jnp.float32,              # f32 accumulate on MXU
    )
    z = z + b_ref[...]                                   # (1, tn) broadcast, f32
    # sigmoid = 1 / (1 + exp(-z)); exp and reciprocal both go to the EUP slot.
    sig = pl.reciprocal(1.0 + jnp.exp(-z), approx=False)
    start = pl.multiple_of(j * block_n, block_n)
    y_blk = y_ref[:, pl.ds(start, block_n)]              # columns matching this out tile
    o_ref[...] = (sig - y_blk).astype(o_ref.dtype)


def _vmem_capacity_bytes():
    try:
        return int(pltpu.get_tpu_info().vmem_capacity_bytes)
    except Exception:
        return 64 << 20          # conservative fallback (v7x-sized VMEM)


def _choose_batch_tile(B: int) -> int:
    # Large tiles amortize the ~0.35us/grid-step overhead (the grid is a
    # sequential loop on a TensorCore); multiple of 8 for f32 sublanes; capped
    # at 1024 rows so very large batches still give >=2 "parallel" steps that
    # can shard across v7x's two TensorCores.
    return max(8, min(1024, _round_up(B, 8)))


def _choose_n_tile(D: int, w_itemsize: int, w_budget_bytes: int) -> int:
    # Keep W whole (resident, single-buffered) when it fits the VMEM budget;
    # otherwise stream it in the largest 128-lane multiple that divides D.
    if D * D * w_itemsize <= w_budget_bytes or D % 128 != 0:
        # TODO(synk): if D is not a 128-multiple AND W does not fit VMEM, pad
        # the feature dim to 128 lanes instead of falling back to full-D W.
        return D
    best = 128
    tn = 128
    while tn <= D:
        if D % tn == 0 and tn * D * w_itemsize <= w_budget_bytes:
            best = tn
        tn += 128
    return best


def simple_nn_forward(weights, biases, y, *, tb=None, tn=None):
    """JAX wrapper reproducing SimpleNN.forward(_, y).

    weights: (D, D) float32 or bfloat16 (PyTorch convention: out i, in j).
             Pass bf16 weights (cast once, outside the hot path) for the
             MXU-native bf16 path; accumulation stays f32 either way.
    biases : (D,)   float32
    y      : (B, D) float32
    """
    B, D = y.shape
    assert weights.shape == (D, D)
    assert biases.shape == (D,)
    # NOTE: if D is not a multiple of 128, output stores are lane-masked
    # (measurably slower); pad the feature dim to 128 lanes where possible.

    w_itemsize = jnp.dtype(weights.dtype).itemsize
    y_itemsize = jnp.dtype(y.dtype).itemsize

    if tb is None:
        tb = _choose_batch_tile(B)
    tb = max(8, (tb // 8) * 8)                    # enforce sublane multiple
    if B >= 8:
        tb = max(8, min(tb, (B // 8) * 8))        # last block partial, not oversized

    cap = (_vmem_capacity_bytes() * 85) // 100    # leave compiler headroom
    if tn is None:
        pipelined = 4 * tb * D * y_itemsize       # y + out tiles, double-buffered
        tn = _choose_n_tile(D, w_itemsize, cap - pipelined - (2 << 20))
    assert tn == D or (D % tn == 0 and tn % 128 == 0)

    n_b = pl.cdiv(B, tb)                          # partial trailing batch block is fine
    n_n = D // tn if tn != D else 1

    # Constant-index blocks (W, bias) only need a single VMEM buffer; when W is
    # streamed over the output dim keep the default double-buffering.
    wb_mode = pl.Buffered(1) if n_n == 1 else pl.Buffered(2)
    w_bufs = 1 if n_n == 1 else 2

    b2 = biases.reshape(1, D).astype(jnp.float32)

    needed = (2 * tb * D * y_itemsize             # y tile, double-buffered
              + 2 * tb * tn * y_itemsize          # out tile, double-buffered
              + w_bufs * tn * D * w_itemsize      # W block(s)
              + 2 * tn * 4                        # bias
              + (2 << 20))                        # slack
    vmem_limit = int(min(cap, max(needed, 16 << 20)))

    cost = pl.CostEstimate(
        flops=2 * B * D * D,
        transcendentals=B * D,
        bytes_accessed=(2 * B * D * y_itemsize
                        + (1 if n_n == 1 else n_b) * D * D * w_itemsize
                        + D * 4),
    )

    kernel = functools.partial(simple_nn_kernel, block_n=tn)

    return pl.pallas_call(
        kernel,
        out_shape=jax.ShapeDtypeStruct((B, D), y.dtype),
        grid_spec=pltpu.PrefetchScalarGridSpec(
            num_scalar_prefetch=0,
            grid=(n_b, n_n),
            in_specs=[
                pl.BlockSpec((tb, D), lambda i, j: (i, 0)),            # y (pipelined)
                pl.BlockSpec((tn, D), lambda i, j: (j, 0),
                             pipeline_mode=wb_mode),                   # W
                pl.BlockSpec((1, tn), lambda i, j: (0, j),
                             pipeline_mode=wb_mode),                   # bias row
            ],
            out_specs=pl.BlockSpec((tb, tn), lambda i, j: (i, j)),
        ),
        compiler_params=pltpu.CompilerParams(
            dimension_semantics=("parallel", "arbitrary"),
            vmem_limit_bytes=vmem_limit,
        ),
        cost_estimate=cost,
    )(y, weights, b2)


def simple_nn_reference(weights, biases, y):
    """Pure-JAX reference matching the PyTorch forward exactly."""
    return -y + jax.nn.sigmoid(jnp.einsum('ij,...j->...i', weights, y) + biases)


if __name__ == "__main__":
    key = jax.random.PRNGKey(0)
    k_w, k_b, k_y = jax.random.split(key, 3)

    B, D = 8, 128   # small, lane-aligned demo shapes
    weights = jax.random.normal(k_w, (D, D), dtype=jnp.float32) * 0.1
    biases = jax.random.normal(k_b, (D,), dtype=jnp.float32) * 0.1
    y = jax.random.normal(k_y, (B, D), dtype=jnp.float32)

    out = jax.block_until_ready(simple_nn_forward(weights, biases, y))
    ref = simple_nn_reference(weights, biases, y)
    assert out.shape == (B, D)
    assert jnp.allclose(out, ref, atol=1e-5, rtol=1e-5), "mismatch vs reference"

    # Ragged batch: partial trailing block, no host-side padding copy.
    B2 = 36
    y2 = jax.random.normal(jax.random.PRNGKey(1), (B2, D), dtype=jnp.float32)
    out2 = jax.block_until_ready(simple_nn_forward(weights, biases, y2))
    ref2 = simple_nn_reference(weights, biases, y2)
    assert out2.shape == (B2, D)
    assert jnp.allclose(out2, ref2, atol=1e-5, rtol=1e-5), "ragged mismatch"

    # Output-dim (N) tiling path: force tn < D as it would be chosen on v7x
    # once D^2 * itemsize no longer fits the VMEM budget.
    D3, B3 = 256, 16
    k_w3, k_b3, k_y3 = jax.random.split(jax.random.PRNGKey(2), 3)
    w3 = jax.random.normal(k_w3, (D3, D3), dtype=jnp.float32) * 0.1
    b3 = jax.random.normal(k_b3, (D3,), dtype=jnp.float32) * 0.1
    y3 = jax.random.normal(k_y3, (B3, D3), dtype=jnp.float32)
    out3 = jax.block_until_ready(simple_nn_forward(w3, b3, y3, tn=128))
    ref3 = simple_nn_reference(w3, b3, y3)
    assert jnp.allclose(out3, ref3, atol=1e-5, rtol=1e-5), "N-tiled mismatch"

    # bf16-weight path (weights cached in bf16 outside the hot path; f32 accumulate).
    w_bf16 = weights.astype(jnp.bfloat16)
    out4 = jax.block_until_ready(simple_nn_forward(w_bf16, biases, y))
    ref4 = simple_nn_reference(w_bf16.astype(jnp.float32), biases, y)
    assert jnp.allclose(out4, ref4, atol=1e-2, rtol=1e-2), "bf16 mismatch"

    print("KERNEL_OK")
</pallas_src>

<mosaic_0001>
module attributes {stable_mosaic.version = 11 : i64} {
  func.func @simple_nn_kernel(%arg0: i32, %arg1: i32, %arg2: memref<8x128xf32, #tpu.memory_space<vmem>>, %arg3: memref<128x128xf32, #tpu.memory_space<vmem>>, %arg4: memref<1x128xf32, #tpu.memory_space<vmem>>, %arg5: memref<8x128xf32, #tpu.memory_space<vmem>>) attributes {dimension_semantics = [#tpu.dimension_semantics<parallel>, #tpu.dimension_semantics<arbitrary>], iteration_bounds = array<i64: 1, 1>, scalar_prefetch = 0 : i64, scratch_operands = 0 : i64, tpu.core_type = #tpu.core_type<tc>, window_params = [{transform_indices = @transform_0, window_bounds = array<i64: 8, 128>}, {pipeline_mode = #tpu.pipeline_mode<synchronous>, transform_indices = @transform_1, window_bounds = array<i64: 128, 128>}, {pipeline_mode = #tpu.pipeline_mode<synchronous>, transform_indices = @transform_2, window_bounds = array<i64: 1, 128>}, {transform_indices = @transform_3, window_bounds = array<i64: 8, 128>}]} {
    %c0 = arith.constant 0 : index
    %c0_0 = arith.constant 0 : index
    %0 = vector.load %arg2[%c0, %c0_0] : memref<8x128xf32, #tpu.memory_space<vmem>>, vector<8x128xf32>
    %c0_1 = arith.constant 0 : index
    %c0_2 = arith.constant 0 : index
    %1 = vector.load %arg3[%c0_1, %c0_2] : memref<128x128xf32, #tpu.memory_space<vmem>>, vector<128x128xf32>
    %cst = arith.constant dense<0.000000e+00> : vector<8x128xf32>
    %2 = tpu.matmul %0, %1, %cst {dimension_numbers = #tpu.dot_dimension_numbers<[1], [1], [0], [0], [0, 0, 1, 0], [], []>} : vector<8x128xf32>, vector<128x128xf32>, vector<8x128xf32> -> vector<8x128xf32>
    %c0_3 = arith.constant 0 : index
    %c0_4 = arith.constant 0 : index
    %3 = vector.load %arg4[%c0_3, %c0_4] : memref<1x128xf32, #tpu.memory_space<vmem>>, vector<1x128xf32>
    %4 = vector.broadcast %3 : vector<1x128xf32> to vector<8x128xf32>
    %5 = arith.addf %2, %4 : vector<8x128xf32>
    %cst_5 = arith.constant 0.000000e+00 : f32
    %6 = vector.broadcast %cst_5 : f32 to vector<8x128xf32>
    %7 = arith.subf %6, %5 : vector<8x128xf32>
    %8 = math.exp %7 : vector<8x128xf32>
    %cst_6 = arith.constant 1.000000e+00 : f32
    %9 = vector.broadcast %cst_6 : f32 to vector<8x128xf32>
    %10 = arith.addf %9, %8 : vector<8x128xf32>
    %11 = tpu.reciprocal %10 : vector<8x128xf32> -> vector<8x128xf32>
    %c128_i32 = arith.constant 128 : i32
    %12 = arith.muli %arg1, %c128_i32 : i32
    %13 = tpu.assume_multiple %12, 128 : i32
    %c0_7 = arith.constant 0 : index
    %14 = arith.index_cast %13 : i32 to index
    %15 = vector.load %arg2[%c0_7, %14] : memref<8x128xf32, #tpu.memory_space<vmem>>, vector<8x128xf32>
    %16 = arith.subf %11, %15 : vector<8x128xf32>
    %c0_8 = arith.constant 0 : index
    %c0_9 = arith.constant 0 : index
    %17 = vector.load %arg5[%c0_8, %c0_9] : memref<8x128xf32, #tpu.memory_space<vmem>>, vector<8x128xf32>
    tpu.vector_store %arg5[%c0_8, %c0_9], %16 {strides = array<i32>} : memref<8x128xf32, #tpu.memory_space<vmem>>, vector<8x128xf32>,
    return
  }
  func.func @transform_0(%arg0: i32, %arg1: i32) -> (i32, i32) {
    %c0_i32 = arith.constant 0 : i32
    %c0_i32_0 = arith.constant 0 : i32
    return %arg0, %c0_i32 : i32, i32
  }
  func.func @transform_1(%arg0: i32, %arg1: i32) -> (i32, i32) {
    %c0_i32 = arith.constant 0 : i32
    %c0_i32_0 = arith.constant 0 : i32
    return %arg1, %c0_i32 : i32, i32
  }
  func.func @transform_2(%arg0: i32, %arg1: i32) -> (i32, i32) {
    %c0_i32 = arith.constant 0 : i32
    %c0_i32_0 = arith.constant 0 : i32
    return %c0_i32, %arg1 : i32, i32
  }
  func.func @transform_3(%arg0: i32, %arg1: i32) -> (i32, i32) {
    %c0_i32 = arith.constant 0 : i32
    return %arg0, %arg1 : i32, i32
  }
}

</mosaic_0001>

<llo_original>
// kernel: tpu_custom_call.1
$region0: #{tpu_custom_call.1}
  #allocation0 [shape = 'u32[]', space=smem, size = 0x4, offset = 0x4, fixed_abs, tag = 'smem constant byte address 0x4 - core index']
  #allocation1 [shape = 'u32[144,128]{1,0:T(1,128)}', space=vmem, size = 0x12000, scoped, tag = 'internal scratch']
  %s0 = inlined_call_operand.hbm [shape: f32[8,128], index: 0, kind: input, shape index: {}]
  %s1 = inlined_call_operand.hbm [shape: f32[128,128], index: 1, kind: input, shape index: {}]
  %s2 = inlined_call_operand.vmem [shape: f32[1,128], index: 2, kind: input, shape index: {}]
  %s3 = inlined_call_operand.hbm [shape: f32[8,128], index: 3, kind: output, shape index: {}]
  %s4 = sld [smem:[#allocation0]]
  $region30: #{tpu_custom_call.1} parent=0
    _
  %s6 = ssub.s32 1, %s4
  %s7 = scalar_select 0, %s6, %s4
  $region1: #{tpu_custom_call.1} parent=0
    #allocation2 [shape = 'u8[4096]{0}', space=vmem, size = 0x1000, scoped, tag = 'input window, operand 0, single buffered']
    #allocation3 [shape = 's32[1]{0}', space=sflag, size = 0x4, scoped, tag = 'scoped memory for tpu_custom_call.1']
    #allocation4 [shape = 's32[1]{0}', space=sflag, size = 0x4, scoped, tag = 'scoped memory for tpu_custom_call.1']
    #allocation5 [shape = 'u8[65536]{0}', space=vmem, size = 0x10000, scoped, tag = 'input window, operand 1, single buffered']
    #allocation6 [shape = 's32[1]{0}', space=sflag, size = 0x4, scoped, tag = 'scoped memory for tpu_custom_call.1']
    #allocation7 [shape = 'u8[4096]{0}', space=vmem, size = 0x1000, scoped, tag = 'output window, operand 0, single buffered']
    %8 = vsyncpa [#allocation3], 0
    %9 = vsyncpa [#allocation6], 0
    %10 = vsyncpa [#allocation4], 0
    // Predicated region
    $region2: #{tpu_custom_call.1} parent=1 // pred_check
      _
    $region3: #{tpu_custom_call.1} parent=1 // pred_check_branch
      %12 = sbr.rel (0) target = $region5
    $region4: #{tpu_custom_call.1} parent=1 // pred_region
      %s14 = ssub.s32 128, 128
      %15 = vsyncadd [#allocation3], %s14
      %s17 = sshll.u32 [#allocation2], 4
      %s18 = int_to_ptr.vmem [resolvable:$true] %s17
      %20 = dma.hbm_to_vmem [thread:$0]  %s0, 128, %s18, [#allocation3]
    $region5: #{tpu_custom_call.1} parent=1 // pred_fallthru
      _
    // Predicated region
    $region6: #{tpu_custom_call.1} parent=1 // pred_check
      _
    $region7: #{tpu_custom_call.1} parent=1 // pred_check_branch
      %22 = sbr.rel (0) target = $region9
    $region8: #{tpu_custom_call.1} parent=1 // pred_region
      %s24 = ssub.s32 2048, 2048
      %25 = vsyncadd [#allocation6], %s24
      %s26 = sshll.u32 [#allocation5], 4
      %s27 = int_to_ptr.vmem [resolvable:$true] %s26
      %32 = dma.hbm_to_vmem [thread:$0]  %s1, 2048, %s27, [#allocation6], 128, 128, 8
    $region9: #{tpu_custom_call.1} parent=1 // pred_fallthru
      _
    // Predicated region
    $region10: #{tpu_custom_call.1} parent=1 // pred_check
      _
    $region11: #{tpu_custom_call.1} parent=1 // pred_check_branch
      %34 = sbr.rel (0) target = $region13
    $region12: #{tpu_custom_call.1} parent=1 // pred_region
      _
    $region13: #{tpu_custom_call.1} parent=1 // pred_fallthru
      _
    // Predicated region
    $region14: #{tpu_custom_call.1} parent=1 // pred_check
      _
    $region15: #{tpu_custom_call.1} parent=1 // pred_check_branch
      %36 = sbr.rel (0) target = $region17
    $region16: #{tpu_custom_call.1} parent=1 // pred_region
      %37 = dma.done [#allocation3], 128
    $region17: #{tpu_custom_call.1} parent=1 // pred_fallthru
      _
    // Predicated region
    $region18: #{tpu_custom_call.1} parent=1 // pred_check
      _
    $region19: #{tpu_custom_call.1} parent=1 // pred_check_branch
      %39 = sbr.rel (0) target = $region21
    $region20: #{tpu_custom_call.1} parent=1 // pred_region
      %40 = dma.done [#allocation6], 2048
    $region21: #{tpu_custom_call.1} parent=1 // pred_fallthru
      _
    %v41 = vld [vmem:[#allocation2] sm:$0xff]
    %v42 = vld [vmem:[#allocation5] sm:$0xff]
    %v43 = vld [vmem:[#allocation5 + $0x8] sm:$0xff]
    %v44 = vld [vmem:[#allocation5 + $0x10] sm:$0xff]
    %v45 = vld [vmem:[#allocation5 + $0x18] sm:$0xff]
    %v46 = vld [vmem:[#allocation5 + $0x20] sm:$0xff]
    %v47 = vld [vmem:[#allocation5 + $0x28] sm:$0xff]
    %v48 = vld [vmem:[#allocation5 + $0x30] sm:$0xff]
    %v49 = vld [vmem:[#allocation5 + $0x38] sm:$0xff]
    %v50 = vld [vmem:[#allocation5 + $0x40] sm:$0xff]
    %v51 = vld [vmem:[#allocation5 + $0x48] sm:$0xff]
    %v52 = vld [vmem:[#allocation5 + $0x50] sm:$0xff]
    %v53 = vld [vmem:[#allocation5 + $0x58] sm:$0xff]
    %v54 = vld [vmem:[#allocation5 + $0x60] sm:$0xff]
    %v55 = vld [vmem:[#allocation5 + $0x68] sm:$0xff]
    %v56 = vld [vmem:[#allocation5 + $0x70] sm:$0xff]
    %v57 = vld [vmem:[#allocation5 + $0x78] sm:$0xff]
    %v58 = vld [vmem:[%s2] sm:$0x1]
    %v60 = vlaneseq
    %v61 = vshrl.u32 %v60, 7
    %v62 = vsub.s32 0, %v61
    %v63 = vrot.slane %v58, %v62
    %65 = vmatprep.subr.mxu0 0.0
    %66 = vmatpush1.xpose.msra.mxu0 %v42
    %67 = vmatprep.subr.mxu0 0.0
    %68 = vmatpush1.xpose.msra.mxu0 %v43
    %69 = vmatprep.subr.mxu0 0.0
    %70 = vmatpush1.xpose.msra.mxu0 %v44
    %71 = vmatprep.subr.mxu0 0.0
    %72 = vmatpush1.xpose.msra.mxu0 %v45
    %73 = vmatprep.subr.mxu0 0.0
    %74 = vmatpush1.xpose.msra.mxu0 %v46
    %75 = vmatprep.subr.mxu0 0.0
    %76 = vmatpush1.xpose.msra.mxu0 %v47
    %77 = vmatprep.subr.mxu0 0.0
    %78 = vmatpush1.xpose.msra.mxu0 %v48
    %79 = vmatprep.subr.mxu0 0.0
    %80 = vmatpush1.xpose.msra.mxu0 %v49
    %81 = vmatprep.subr.mxu0 0.0
    %82 = vmatpush1.xpose.msra.mxu0 %v50
    %83 = vmatprep.subr.mxu0 0.0
    %84 = vmatpush1.xpose.msra.mxu0 %v51
    %85 = vmatprep.subr.mxu0 0.0
    %86 = vmatpush1.xpose.msra.mxu0 %v52
    %87 = vmatprep.subr.mxu0 0.0
    %88 = vmatpush1.xpose.msra.mxu0 %v53
    %89 = vmatprep.subr.mxu0 0.0
    %90 = vmatpush1.xpose.msra.mxu0 %v54
    %91 = vmatprep.subr.mxu0 0.0
    %92 = vmatpush1.xpose.msra.mxu0 %v55
    %93 = vmatprep.subr.mxu0 0.0
    %94 = vmatpush1.xpose.msra.mxu0 %v56
    %95 = vmatprep.subr.mxu0 0.0
    %96 = vmatpush1.xpose.msra.mxu0 %v57
    %97 = vmatprep.subr.mxu0 0.0
    %98 = vmatpush1.xpose.msra.mxu0 0.0
    %99 = vmatprep.subr.mxu0 0.0
    %100 = vmatpush1.xpose.msra.mxu0 0.0
    %101 = vmatprep.subr.mxu0 0.0
    %102 = vmatpush1.xpose.msra.mxu0 0.0
    %103 = vmatprep.subr.mxu0 0.0
    %104 = vmatpush1.xpose.msra.mxu0 0.0
    %105 = vmatprep.subr.mxu0 0.0
    %106 = vmatpush1.xpose.msra.mxu0 0.0
    %107 = vmatprep.subr.mxu0 0.0
    %108 = vmatpush1.xpose.msra.mxu0 0.0
    %109 = vmatprep.subr.mxu0 0.0
    %110 = vmatpush1.xpose.msra.mxu0 0.0
    %111 = vmatprep.subr.mxu0 0.0
    %112 = vmatpush1.xpose.msra.mxu0 0.0
    %113 = vmatprep.subr.mxu0 0.0
    %114 = vmatpush1.xpose.msra.mxu0 0.0
    %115 = vmatprep.subr.mxu0 0.0
    %116 = vmatpush1.xpose.msra.mxu0 0.0
    %117 = vmatprep.subr.mxu0 0.0
    %118 = vmatpush1.xpose.msra.mxu0 0.0
    %119 = vmatprep.subr.mxu0 0.0
    %120 = vmatpush1.xpose.msra.mxu0 0.0
    %121 = vmatprep.subr.mxu0 0.0
    %122 = vmatpush1.xpose.msra.mxu0 0.0
    %123 = vmatprep.subr.mxu0 0.0
    %124 = vmatpush1.xpose.msra.mxu0 0.0
    %125 = vmatprep.subr.mxu0 0.0
    %126 = vmatpush1.xpose.msra.mxu0 0.0
    %127 = vmatprep.subr.mxu0 0.0
    %128 = vmatpush1.xpose.msra.mxu0 0.0
    %129 = vmatprep.mubr.f32.mxu0 0.0
    %130 = vmatmul.mubr.f32.gmra.mrb[0].mxu0 %v41
    %v131 = vpop.f32.mrb[0].mxu0
    %v132 = vadd.f32 %v63, %v131
    %v133 = vpop.f32.mrb[0].mxu0
    %134 = vdwg.mxu0
    %v135 = vsub.f32 0.0, %v132
    %v136 = vmul.f32 %v135, 1.442695
    %v137 = vpow.pop %v136
    %v138 = vadd.f32 %v137, 1.0
    %v139 = vrcp.pop %v138
    %s140 = smul.u32 0, 128
    %s141 = sshra.s32 %s140, 7
    %s142 = sand.u32 %s140, 127
    %s143 = scalar_lea.vmem [#allocation2], %s141
    %v144 = vld [vmem:[%s143] sm:$0xff]
    %v145 = vsub.f32 %v139, %v144
    %146 = vst [vmem:[#allocation7] sm:$0xff] %v145
    // Predicated region
    $region22: #{tpu_custom_call.1} parent=1 // pred_check
      _
    $region23: #{tpu_custom_call.1} parent=1 // pred_check_branch
      %148 = sbr.rel (0) target = $region25
    $region24: #{tpu_custom_call.1} parent=1 // pred_region
      %s150 = ssub.s32 128, 128
      %151 = vsyncadd [#allocation4], %s150
      %s153 = sshll.u32 [#allocation7], 4
      %s154 = int_to_ptr.vmem [resolvable:$true] %s153
      %156 = dma.vmem_to_hbm [thread:$0]  %s154, 128, %s3, [#allocation4]
    $region25: #{tpu_custom_call.1} parent=1 // pred_fallthru
      _
    // Predicated region
    $region26: #{tpu_custom_call.1} parent=1 // pred_check
      _
    $region27: #{tpu_custom_call.1} parent=1 // pred_check_branch
      %158 = sbr.rel (0) target = $region29
    $region28: #{tpu_custom_call.1} parent=1 // pred_region
      %159 = dma.done [#allocation4], 128
    $region29: #{tpu_custom_call.1} parent=1 // pred_fallthru
      _
    %160 = vsyncpa [#allocation3], 1
    %161 = vsyncpa [#allocation6], 1
    %162 = vsyncpa [#allocation4], 1

</llo_original>
